<compile_context>
chip_gen: v7x
topology: tpu7x:2x2x1
jax: 0.10.0
libtpu: 0.0.40
codegen_flags: <defaults>
</compile_context>

<pallas_src>
import functools

import jax
import jax.numpy as jnp
import numpy as np
from jax import lax
from jax.experimental import pallas as pl
from jax.experimental.pallas import tpu as pltpu

_LANE = 128
_SUBLANE = 8


def _round_up(x: int, m: int) -> int:
    return (x + m - 1) // m * m


def _valid_region_loss_kernel(label_ref, logits_ref, pmask_ref, nmask_ref,
                              part_ref, *, base_loss: str, pos_weight: float,
                              gce_q: float, use_prostate: bool,
                              use_needle: bool, needs_bounds: bool,
                              hw: int, tr: int):
    """One grid step reduces a (1, C, tr, 128) logits block against its
    valid-region mask and writes a single packed (1,1,8,128) partial tile:
    loss partial at [0,0], valid-count partial at [1,0], zeros elsewhere."""
    b = pl.program_id(0)
    j = pl.program_id(1)
    y = label_ref[b]                                    # SMEM scalar (f32)

    x = logits_ref[...].astype(jnp.float32)             # (1, C, tr, 128)

    # Fused valid-region mask: optional bounds check (tail tile / spatial
    # padding) AND the float prostate / needle masks in their native dtype.
    conds = []
    if needs_bounds:
        row = lax.broadcasted_iota(jnp.int32, (1, 1, tr, _LANE), 2)
        lane = lax.broadcasted_iota(jnp.int32, (1, 1, tr, _LANE), 3)
        pos = (j * tr + row) * _LANE + lane              # global flat spatial idx
        conds.append(pos < hw)
    if use_prostate:
        conds.append(pmask_ref[...] > 0.5)
    if use_needle:
        conds.append(nmask_ref[...] > 0.5)

    if base_loss == "ce":
        # binary_cross_entropy_with_logits(x, y, pos_weight); label broadcast over C.
        softplus_neg = jnp.log(1.0 + jnp.exp(-jnp.abs(x))) + jnp.maximum(-x, 0.0)
        log_weight = 1.0 + (pos_weight - 1.0) * y
        elem = (1.0 - y) * x + log_weight * softplus_neg          # (1,C,tr,128)
    elif base_loss == "gce":
        # Binary generalized cross entropy (channel 0 only).
        x0 = x[:, 0:1, :, :]                                       # (1,1,tr,128)
        p = pl.reciprocal(1.0 + jnp.exp(-x0), approx=True)         # sigmoid via EUP
        p_sel = jnp.where(y > 0.5, p, 1.0 - p)
        p_sel = jnp.clip(p_sel, 1e-7, 1.0)
        elem = (1.0 - jnp.exp(gce_q * jnp.log(p_sel))) / gce_q     # (1,1,tr,128)
    elif base_loss == "mae":
        w = jnp.where(y > 0.5, jnp.float32(pos_weight), jnp.float32(1.0))
        elem = jnp.abs(x - y) * w                                  # (1,C,tr,128)
    else:
        raise ValueError(f"Unknown base loss: {base_loss}")

    if conds:
        valid = conds[0]
        for c in conds[1:]:
            valid = jnp.logical_and(valid, c)                      # (1,1,tr,128)
        # Select (not multiply): garbage in out-of-bounds rows cannot produce NaN.
        loss_psum = jnp.sum(jnp.where(valid, elem, 0.0))
        cnt_psum = jnp.sum(valid.astype(jnp.float32))
    else:
        loss_psum = jnp.sum(elem)
        cnt_psum = jnp.float32(tr * _LANE)

    # Pack both partials into one lane-dense output tile (exact: single
    # nonzero per row -> contiguous row-sum in the wrapper recovers scalars).
    sub = lax.broadcasted_iota(jnp.int32, (1, 1, _SUBLANE, _LANE), 2)
    lane = lax.broadcasted_iota(jnp.int32, (1, 1, _SUBLANE, _LANE), 3)
    zeros = jnp.zeros((1, 1, _SUBLANE, _LANE), jnp.float32)
    tile = jnp.where((sub == 0) & (lane == 0), loss_psum,
                     jnp.where((sub == 1) & (lane == 0), cnt_psum, zeros))
    part_ref[...] = tile


def cancer_detection_valid_region_loss(cancer_logits, prostate_mask, needle_mask,
                                       label, involvement=None, *,
                                       base_loss: str = "ce",
                                       loss_pos_weight: float = 1.0,
                                       use_prostate_mask: bool = True,
                                       use_needle_mask: bool = True,
                                       gce_q: float = 0.7,
                                       vmem_tile_budget_bytes: int = 8 << 20):
    """Scalar loss, matching CancerDetectionValidRegionLoss.forward.
    `involvement` is accepted but unused (as in the PyTorch module)."""
    B, C, H, W = cancer_logits.shape
    assert prostate_mask.shape == (B, 1, H, W)
    assert needle_mask.shape == (B, 1, H, W)
    HW = H * W
    HW128 = _round_up(HW, _LANE)
    R = HW128 // _LANE                     # number of 128-lane spatial rows

    # Native-dtype, free reshapes (no transpose, no cast): NCHW -> (B, C, HW).
    logits = cancer_logits.reshape(B, C, HW)
    pmask = prostate_mask.reshape(B, 1, HW)
    nmask = needle_mask.reshape(B, 1, HW)
    if HW128 != HW:
        # Rare path (HW not a multiple of 128): minimal pad so the sublane-dense
        # reshape exists.  Padded positions are excluded by the in-kernel bounds mask.
        pad = HW128 - HW
        logits = jnp.pad(logits, ((0, 0), (0, 0), (0, pad)))
        pmask = jnp.pad(pmask, ((0, 0), (0, 0), (0, pad)))
        nmask = jnp.pad(nmask, ((0, 0), (0, 0), (0, pad)))
    # Sublane-dense layout: spatial axis -> (rows, 128 lanes).
    logits = logits.reshape(B, C, R, _LANE)
    pmask = pmask.reshape(B, 1, R, _LANE)
    nmask = nmask.reshape(B, 1, R, _LANE)
    lab = jnp.asarray(label).reshape(B).astype(jnp.float32)   # tiny (B,) -> SMEM

    # Row-tile size: as many 8-row groups as fit the per-buffer VMEM budget.
    bytes_per_row = _LANE * (C * logits.dtype.itemsize
                             + pmask.dtype.itemsize + nmask.dtype.itemsize)
    tr_cap = max(_SUBLANE,
                 (int(vmem_tile_budget_bytes) // bytes_per_row)
                 // _SUBLANE * _SUBLANE)
    if R <= _SUBLANE:
        tr = R                                   # full-extent block (tiny inputs)
    else:
        tr = min(tr_cap, (R // _SUBLANE) * _SUBLANE)
    nrt = -(-R // tr)                            # grid steps along rows
    needs_bounds = (R % tr != 0) or (HW128 != HW)

    tile_in_bytes = tr * bytes_per_row
    vmem_limit = int(2 * tile_in_bytes + (4 << 20))   # double-buffer + headroom

    kernel = functools.partial(
        _valid_region_loss_kernel,
        base_loss=base_loss, pos_weight=float(loss_pos_weight),
        gce_q=float(gce_q), use_prostate=bool(use_prostate_mask),
        use_needle=bool(use_needle_mask), needs_bounds=needs_bounds,
        hw=HW, tr=tr)

    parts = pl.pallas_call(
        kernel,
        out_shape=jax.ShapeDtypeStruct((B, nrt, _SUBLANE, _LANE), jnp.float32),
        grid_spec=pltpu.PrefetchScalarGridSpec(
            num_scalar_prefetch=1,                  # label -> SMEM scalars
            grid=(B, nrt),
            in_specs=[
                pl.BlockSpec((1, C, tr, _LANE), lambda b, j, lab: (b, 0, j, 0)),
                pl.BlockSpec((1, 1, tr, _LANE), lambda b, j, lab: (b, 0, j, 0)),
                pl.BlockSpec((1, 1, tr, _LANE), lambda b, j, lab: (b, 0, j, 0)),
            ],
            out_specs=pl.BlockSpec((1, 1, _SUBLANE, _LANE),
                                   lambda b, j, lab: (b, j, 0, 0)),
        ),
        compiler_params=pltpu.CompilerParams(
            dimension_semantics=("parallel", "parallel"),
            vmem_limit_bytes=vmem_limit),
    )(lab, logits, pmask, nmask)

    # Contiguous epilogue: loss partials live on sublane 0 (single nonzero at
    # lane 0), counts on sublane 1 -> row sums are exact.
    loss_sum = jnp.sum(parts[:, :, 0, :])
    num_valid = jnp.sum(parts[:, :, 1, :])
    denom = num_valid if base_loss == "gce" else num_valid * C
    # TODO(synk): num_valid == 0 yields NaN, matching PyTorch's mean over an
    # empty masked set.
    return loss_sum / denom


if __name__ == "__main__":
    B, C, H, W = 2, 1, 16, 16
    key = jax.random.PRNGKey(0)
    k1, k2, k3, k4 = jax.random.split(key, 4)
    cancer_logits = jax.random.normal(k1, (B, C, H, W), dtype=jnp.float32)
    prostate_mask = jax.random.uniform(k2, (B, 1, H, W), dtype=jnp.float32)
    needle_mask = jax.random.uniform(k3, (B, 1, H, W), dtype=jnp.float32)
    label = jax.random.bernoulli(k4, 0.5, (B,)).astype(jnp.float32)

    configs = [("ce", 2.0), ("gce", 1.0), ("mae", 2.0)]
    results = {}
    for name, pw in configs:
        loss = cancer_detection_valid_region_loss(
            cancer_logits, prostate_mask, needle_mask, label,
            base_loss=name, loss_pos_weight=pw)
        results[name] = (np.asarray(jax.block_until_ready(loss)), pw)

    # ---- NumPy reference of the PyTorch semantics -------------------------
    hm = np.asarray(cancer_logits, dtype=np.float64)
    pm = np.asarray(prostate_mask, dtype=np.float64)
    nm = np.asarray(needle_mask, dtype=np.float64)
    labf = np.asarray(label, dtype=np.float64)

    mask = (pm > 0.5) & (nm > 0.5)                       # (B,1,H,W)
    mflat = mask[:, 0].reshape(-1)                       # (B*H*W,)
    preds = np.transpose(hm, (0, 2, 3, 1)).reshape(-1, C)[mflat]   # (n, C)
    bidx = np.repeat(np.arange(B), H * W)[mflat]
    y = labf[bidx][:, None]                              # (n, 1)

    def ref_loss(name, pw):
        x = preds
        if name == "ce":
            lw = 1.0 + (pw - 1.0) * y
            elem = (1.0 - y) * x + lw * (np.log1p(np.exp(-np.abs(x)))
                                         + np.maximum(-x, 0.0))
            return elem.mean()
        if name == "gce":
            p = 1.0 / (1.0 + np.exp(-x[:, 0]))
            py = np.clip(np.where(y[:, 0] > 0.5, p, 1.0 - p), 1e-7, 1.0)
            q = 0.7
            return ((1.0 - py ** q) / q).mean()
        if name == "mae":
            elem = np.abs(x - y) * np.where(y > 0.5, pw, 1.0)
            return elem.mean()
        raise ValueError(name)

    for name, (got, pw) in results.items():
        want = ref_loss(name, pw)
        if name == "gce":
            # EUP approximate reciprocal in the fused sigmoid -> slightly looser tol.
            np.testing.assert_allclose(got, want, rtol=1e-3, atol=1e-5)
        else:
            np.testing.assert_allclose(got, want, rtol=1e-5, atol=1e-6)

    print("KERNEL_OK")
</pallas_src>

<mosaic_0001>
module attributes {stable_mosaic.version = 11 : i64} {
  func.func @_valid_region_loss_kernel(%arg0: i32, %arg1: i32, %arg2: memref<2xf32, #tpu.memory_space<smem>>, %arg3: memref<1x1x2x128xf32, #tpu.memory_space<vmem>>, %arg4: memref<1x1x2x128xf32, #tpu.memory_space<vmem>>, %arg5: memref<1x1x2x128xf32, #tpu.memory_space<vmem>>, %arg6: memref<1x1x8x128xf32, #tpu.memory_space<vmem>>) attributes {dimension_semantics = [#tpu.dimension_semantics<parallel>, #tpu.dimension_semantics<parallel>], iteration_bounds = array<i64: 2, 1>, scalar_prefetch = 1 : i64, scratch_operands = 0 : i64, tpu.core_type = #tpu.core_type<tc>, window_params = [{transform_indices = @transform_0, window_bounds = array<i64: 1, 1, 2, 128>}, {transform_indices = @transform_1, window_bounds = array<i64: 1, 1, 2, 128>}, {transform_indices = @transform_2, window_bounds = array<i64: 1, 1, 2, 128>}, {transform_indices = @transform_3, window_bounds = array<i64: 1, 1, 8, 128>}]} {
    %0 = arith.index_cast %arg0 : i32 to index
    %1 = memref.load %arg2[%0] : memref<2xf32, #tpu.memory_space<smem>>
    %c0 = arith.constant 0 : index
    %c0_0 = arith.constant 0 : index
    %c0_1 = arith.constant 0 : index
    %c0_2 = arith.constant 0 : index
    %2 = vector.load %arg3[%c0, %c0_0, %c0_1, %c0_2] : memref<1x1x2x128xf32, #tpu.memory_space<vmem>>, vector<1x1x2x128xf32>
    %c0_3 = arith.constant 0 : index
    %c0_4 = arith.constant 0 : index
    %c0_5 = arith.constant 0 : index
    %c0_6 = arith.constant 0 : index
    %3 = vector.load %arg4[%c0_3, %c0_4, %c0_5, %c0_6] : memref<1x1x2x128xf32, #tpu.memory_space<vmem>>, vector<1x1x2x128xf32>
    %cst = arith.constant 5.000000e-01 : f32
    %4 = vector.broadcast %cst : f32 to vector<1x1x2x128xf32>
    %5 = arith.cmpf ogt, %3, %4 : vector<1x1x2x128xf32>
    %c0_7 = arith.constant 0 : index
    %c0_8 = arith.constant 0 : index
    %c0_9 = arith.constant 0 : index
    %c0_10 = arith.constant 0 : index
    %6 = vector.load %arg5[%c0_7, %c0_8, %c0_9, %c0_10] : memref<1x1x2x128xf32, #tpu.memory_space<vmem>>, vector<1x1x2x128xf32>
    %cst_11 = arith.constant 5.000000e-01 : f32
    %7 = vector.broadcast %cst_11 : f32 to vector<1x1x2x128xf32>
    %8 = arith.cmpf ogt, %6, %7 : vector<1x1x2x128xf32>
    %9 = math.absf %2 : vector<1x1x2x128xf32>
    %cst_12 = arith.constant 0.000000e+00 : f32
    %10 = vector.broadcast %cst_12 : f32 to vector<1x1x2x128xf32>
    %11 = arith.subf %10, %9 : vector<1x1x2x128xf32>
    %12 = math.exp %11 : vector<1x1x2x128xf32>
    %cst_13 = arith.constant 1.000000e+00 : f32
    %13 = vector.broadcast %cst_13 : f32 to vector<1x1x2x128xf32>
    %14 = arith.addf %13, %12 : vector<1x1x2x128xf32>
    %15 = math.log %14 : vector<1x1x2x128xf32>
    %cst_14 = arith.constant 0.000000e+00 : f32
    %16 = vector.broadcast %cst_14 : f32 to vector<1x1x2x128xf32>
    %17 = arith.subf %16, %2 : vector<1x1x2x128xf32>
    %cst_15 = arith.constant 0.000000e+00 : f32
    %18 = vector.broadcast %cst_15 : f32 to vector<1x1x2x128xf32>
    %19 = arith.maximumf %17, %18 : vector<1x1x2x128xf32>
    %20 = arith.addf %15, %19 : vector<1x1x2x128xf32>
    %cst_16 = arith.constant 1.000000e+00 : f32
    %21 = arith.mulf %cst_16, %1 : f32
    %cst_17 = arith.constant 1.000000e+00 : f32
    %22 = arith.addf %cst_17, %21 : f32
    %cst_18 = arith.constant 1.000000e+00 : f32
    %23 = arith.subf %cst_18, %1 : f32
    %24 = vector.broadcast %23 : f32 to vector<1x1x2x128xf32>
    %25 = arith.mulf %24, %2 : vector<1x1x2x128xf32>
    %26 = vector.broadcast %22 : f32 to vector<1x1x2x128xf32>
    %27 = arith.mulf %26, %20 : vector<1x1x2x128xf32>
    %28 = arith.addf %25, %27 : vector<1x1x2x128xf32>
    %29 = arith.andi %5, %8 : vector<1x1x2x128xi1>
    %cst_19 = arith.constant 0.000000e+00 : f32
    %30 = vector.broadcast %cst_19 : f32 to vector<1x1x2x128xf32>
    %31 = arith.select %29, %28, %30 : vector<1x1x2x128xi1>, vector<1x1x2x128xf32>
    %32 = vector.shape_cast %31 : vector<1x1x2x128xf32> to vector<1x1x1x2x128xf32>
    %cst_20 = arith.constant dense<0.000000e+00> : vector<1xf32>
    %33 = vector.multi_reduction <add>, %32, %cst_20 [1, 2, 3, 4] : vector<1x1x1x2x128xf32> to vector<1xf32>
    %34 = vector.shape_cast %33 : vector<1xf32> to vector<1x1x1x1x1xf32>
    %35 = vector.extract %34[0, 0, 0, 0, 0] : f32 from vector<1x1x1x1x1xf32>
    %36 = arith.extui %29 : vector<1x1x2x128xi1> to vector<1x1x2x128xi32>
    %37 = arith.sitofp %36 : vector<1x1x2x128xi32> to vector<1x1x2x128xf32>
    %38 = vector.shape_cast %37 : vector<1x1x2x128xf32> to vector<1x1x1x2x128xf32>
    %cst_21 = arith.constant dense<0.000000e+00> : vector<1xf32>
    %39 = vector.multi_reduction <add>, %38, %cst_21 [1, 2, 3, 4] : vector<1x1x1x2x128xf32> to vector<1xf32>
    %40 = vector.shape_cast %39 : vector<1xf32> to vector<1x1x1x1x1xf32>
    %41 = vector.extract %40[0, 0, 0, 0, 0] : f32 from vector<1x1x1x1x1xf32>
    %42 = tpu.iota {dimensions = array<i32: 2>} : vector<1x1x8x128xi32>
    %43 = tpu.iota {dimensions = array<i32: 3>} : vector<1x1x8x128xi32>
    %cst_22 = arith.constant 0.000000e+00 : f32
    %44 = vector.broadcast %cst_22 : f32 to vector<1x1x8x128xf32>
    %c0_i32 = arith.constant 0 : i32
    %45 = vector.broadcast %c0_i32 : i32 to vector<1x1x8x128xi32>
    %46 = arith.cmpi eq, %42, %45 : vector<1x1x8x128xi32>
    %c0_i32_23 = arith.constant 0 : i32
    %47 = vector.broadcast %c0_i32_23 : i32 to vector<1x1x8x128xi32>
    %48 = arith.cmpi eq, %43, %47 : vector<1x1x8x128xi32>
    %49 = arith.andi %46, %48 : vector<1x1x8x128xi1>
    %c1_i32 = arith.constant 1 : i32
    %50 = vector.broadcast %c1_i32 : i32 to vector<1x1x8x128xi32>
    %51 = arith.cmpi eq, %42, %50 : vector<1x1x8x128xi32>
    %c0_i32_24 = arith.constant 0 : i32
    %52 = vector.broadcast %c0_i32_24 : i32 to vector<1x1x8x128xi32>
    %53 = arith.cmpi eq, %43, %52 : vector<1x1x8x128xi32>
    %54 = arith.andi %51, %53 : vector<1x1x8x128xi1>
    %55 = vector.broadcast %41 : f32 to vector<1x1x8x128xf32>
    %56 = arith.select %54, %55, %44 : vector<1x1x8x128xi1>, vector<1x1x8x128xf32>
    %57 = vector.broadcast %35 : f32 to vector<1x1x8x128xf32>
    %58 = arith.select %49, %57, %56 : vector<1x1x8x128xi1>, vector<1x1x8x128xf32>
    %c0_25 = arith.constant 0 : index
    %c0_26 = arith.constant 0 : index
    %c0_27 = arith.constant 0 : index
    %c0_28 = arith.constant 0 : index
    %59 = vector.load %arg6[%c0_25, %c0_26, %c0_27, %c0_28] : memref<1x1x8x128xf32, #tpu.memory_space<vmem>>, vector<1x1x8x128xf32>
    tpu.vector_store %arg6[%c0_25, %c0_26, %c0_27, %c0_28], %58 {strides = array<i32>} : memref<1x1x8x128xf32, #tpu.memory_space<vmem>>, vector<1x1x8x128xf32>,
    return
  }
  func.func @transform_0(%arg0: i32, %arg1: i32, %arg2: memref<2xf32, #tpu.memory_space<smem>>) -> (i32, i32, i32, i32) {
    %c0_i32 = arith.constant 0 : i32
    %c0_i32_0 = arith.constant 0 : i32
    %c0_i32_1 = arith.constant 0 : i32
    return %arg0, %c0_i32, %arg1, %c0_i32_0 : i32, i32, i32, i32
  }
  func.func @transform_1(%arg0: i32, %arg1: i32, %arg2: memref<2xf32, #tpu.memory_space<smem>>) -> (i32, i32, i32, i32) {
    %c0_i32 = arith.constant 0 : i32
    %c0_i32_0 = arith.constant 0 : i32
    %c0_i32_1 = arith.constant 0 : i32
    return %arg0, %c0_i32, %arg1, %c0_i32_0 : i32, i32, i32, i32
  }
  func.func @transform_2(%arg0: i32, %arg1: i32, %arg2: memref<2xf32, #tpu.memory_space<smem>>) -> (i32, i32, i32, i32) {
    %c0_i32 = arith.constant 0 : i32
    %c0_i32_0 = arith.constant 0 : i32
    %c0_i32_1 = arith.constant 0 : i32
    return %arg0, %c0_i32, %arg1, %c0_i32_0 : i32, i32, i32, i32
  }
  func.func @transform_3(%arg0: i32, %arg1: i32, %arg2: memref<2xf32, #tpu.memory_space<smem>>) -> (i32, i32, i32, i32) {
    %c0_i32 = arith.constant 0 : i32
    %c0_i32_0 = arith.constant 0 : i32
    %c0_i32_1 = arith.constant 0 : i32
    return %arg0, %arg1, %c0_i32, %c0_i32_0 : i32, i32, i32, i32
  }
}

</mosaic_0001>

<llo_original>
// kernel: tpu_custom_call.1
$region0: #{tpu_custom_call.1}
  #allocation0 [shape = 'u32[]', space=smem, size = 0x4, offset = 0x4, fixed_abs, tag = 'smem constant byte address 0x4 - core index']
  #allocation1 [shape = 'u32[144,128]{1,0:T(1,128)}', space=vmem, size = 0x12000, scoped, tag = 'internal scratch']
  #allocation2 [shape = 's32[1]{0}', space=sflag, size = 0x4, scoped, tag = 'scoped memory for tpu_custom_call.1']
  #allocation3 [shape = 'u8[512]{0}', space=smem, size = 0x200, scoped, tag = 'prefetched SMEM operand 0']
  %s0 = inlined_call_operand.hbm [shape: f32[2], index: 0, kind: input, shape index: {}]
  %s1 = inlined_call_operand.hbm [shape: f32[2,1,2,128], index: 1, kind: input, shape index: {}]
  %s2 = inlined_call_operand.vmem [shape: f32[2,1,2,128], index: 2, kind: input, shape index: {}]
  %s3 = inlined_call_operand.vmem [shape: f32[2,1,2,128], index: 3, kind: input, shape index: {}]
  %s4 = inlined_call_operand.hbm [shape: f32[2,1,8,128], index: 4, kind: output, shape index: {}]
  %s5 = sld [smem:[#allocation0]]
  $region49: #{tpu_custom_call.1} parent=0
    _
  %s7 = ssub.s32 1, %s5
  %s8 = scalar_select 0, %s7, %s5
  %10 = dma.hbm_to_smem %s0, 16, [#allocation3], [#allocation2]
  %11 = dma.done [#allocation2], 16
  %12 = sfence
  $region1: #{tpu_custom_call.1} parent=0
    #allocation4 [shape = 'u8[2048]{0}', space=vmem, size = 0x800, scoped, tag = 'input window, operand 1']
    #allocation5 [shape = 's32[2]{0}', space=sflag, size = 0x8, scoped, tag = 'scoped memory for tpu_custom_call.1']
    #allocation6 [shape = 's32[2]{0}', space=sflag, size = 0x8, scoped, tag = 'scoped memory for tpu_custom_call.1']
    #allocation7 [shape = 'u8[8192]{0}', space=vmem, size = 0x2000, scoped, tag = 'output window, operand 0']
    %13 = vsyncpa [#allocation5], 0
    %s14 = scalar_lea.sflag [#allocation5], 1
    %15 = vsyncpa %s14, 0
    %16 = vsyncpa [#allocation6], 0
    %s17 = scalar_lea.sflag [#allocation6], 1
    %18 = vsyncpa %s17, 0
    loop: start=0, step=1, limit=4
    $region2: #{tpu_custom_call.1} parent=1 // loop_pre_header
      _
    $region3: #{tpu_custom_call.1} parent=1 // loop_header
      %s20 = sphi 0, %s24
      %p21 = scmp.ge.s32.totalorder %s20, 4
      %s27 = sphi 0, %s39
      %s28 = sphi 0, %s35
      %s29 = sphi 0, %s27
      %s30 = sphi 0, %s28
      %s31 = sphi 0, %s29
      %s32 = sphi 0, %s30
      %s44 = sphi 0, %s46
      %s47 = sphi 0, %s44
      %s48 = sphi 0, %s47
      %s64 = sphi 0, %s48
      %s72 = sphi 0, %s74
      %s75 = sphi 0, %s72
      %s76 = sphi 0, %s75
      %s92 = sphi 0, %s76
      %s100 = sphi 0, %s102
      %s103 = sphi 0, %s100
      %s104 = sphi 0, %s103
      %s120 = sphi 0, %s104
      %s128 = sphi 0, %s130
      %s131 = sphi 0, %s128
      %s132 = sphi 0, %s131
      %s148 = sphi 0, %s132
    $region4: #{tpu_custom_call.1} parent=1 // loop_header_branch
      %23 = sbr.rel (%p21) target = $region8
    $region5: #{tpu_custom_call.1} parent=1 // loop_body
      %s25 = ssub.s32 %s20, 1
      %s26 = ssub.s32 %s20, 2
      %s33 = sadd.s32 1, %s28
      %p34 = scmp.ge.s32.totalorder %s33, 1
      %s35 = scalar_select %p34, 0, %s33
      %s36 = sadd.s32 1, %s27
      %s37 = scalar_select %p34, %s36, %s27
      %p38 = scmp.ge.s32.totalorder %s37, 2
      %s39 = scalar_select %p38, 0, %s37
      %s40 = ssub.s32 %s27, %s39
      %s41 = ssub.s32 %s28, %s35
      %s42 = sor.u32 %s40, %s41
      %p43 = scmp.eq.s32.totalorder %s42, 0
      %s45 = sadd.s32 %s44, 1
      %s46 = scalar_select %p43, %s44, %s45
      %p49 = pneg %p43
      %p50 = scmp.eq.s32.totalorder %s20, 1
      %p51 = por %p49, %p50
      %p52 = scmp.ne.s32.totalorder %s44, %s47
      %p53 = scmp.eq.s32.totalorder %s20, 0
      %p54 = por %p52, %p53
      %p55 = scmp.ne.s32.totalorder %s44, %s47
      %p56 = scmp.eq.s32.totalorder %s25, 1
      %p57 = por %p55, %p56
      %p58 = scmp.ne.s32.totalorder %s47, %s48
      %p59 = scmp.eq.s32.totalorder %s25, 0
      %p60 = por %p58, %p59
      %p61 = scmp.ne.s32.totalorder %s47, %s48
      %p62 = scmp.eq.s32.totalorder %s26, 1
      %p63 = por %p61, %p62
      %p65 = scmp.ne.s32.totalorder %s48, %s64
      %p66 = scmp.eq.s32.totalorder %s26, 0
      %p67 = por %p65, %p66
      %s68 = ssub.s32 %s27, %s39
      %s69 = ssub.s32 %s28, %s35
      %s70 = sor.u32 %s68, %s69
      %p71 = scmp.eq.s32.totalorder %s70, 0
      %s73 = sadd.s32 %s72, 1
      %s74 = scalar_select %p71, %s72, %s73
      %p77 = pneg %p71
      %p78 = scmp.eq.s32.totalorder %s20, 1
      %p79 = por %p77, %p78
      %p80 = scmp.ne.s32.totalorder %s72, %s75
      %p81 = scmp.eq.s32.totalorder %s20, 0
      %p82 = por %p80, %p81
      %p83 = scmp.ne.s32.totalorder %s72, %s75
      %p84 = scmp.eq.s32.totalorder %s25, 1
      %p85 = por %p83, %p84
      %p86 = scmp.ne.s32.totalorder %s75, %s76
      %p87 = scmp.eq.s32.totalorder %s25, 0
      %p88 = por %p86, %p87
      %p89 = scmp.ne.s32.totalorder %s75, %s76
      %p90 = scmp.eq.s32.totalorder %s26, 1
      %p91 = por %p89, %p90
      %p93 = scmp.ne.s32.totalorder %s76, %s92
      %p94 = scmp.eq.s32.totalorder %s26, 0
      %p95 = por %p93, %p94
      %s96 = ssub.s32 %s27, %s39
      %s97 = ssub.s32 %s28, %s35
      %s98 = sor.u32 %s96, %s97
      %p99 = scmp.eq.s32.totalorder %s98, 0
      %s101 = sadd.s32 %s100, 1
      %s102 = scalar_select %p99, %s100, %s101
      %p105 = pneg %p99
      %p106 = scmp.eq.s32.totalorder %s20, 1
      %p107 = por %p105, %p106
      %p108 = scmp.ne.s32.totalorder %s100, %s103
      %p109 = scmp.eq.s32.totalorder %s20, 0
      %p110 = por %p108, %p109
      %p111 = scmp.ne.s32.totalorder %s100, %s103
      %p112 = scmp.eq.s32.totalorder %s25, 1
      %p113 = por %p111, %p112
      %p114 = scmp.ne.s32.totalorder %s103, %s104
      %p115 = scmp.eq.s32.totalorder %s25, 0
      %p116 = por %p114, %p115
      %p117 = scmp.ne.s32.totalorder %s103, %s104
      %p118 = scmp.eq.s32.totalorder %s26, 1
      %p119 = por %p117, %p118
      %p121 = scmp.ne.s32.totalorder %s104, %s120
      %p122 = scmp.eq.s32.totalorder %s26, 0
      %p123 = por %p121, %p122
      %s124 = ssub.s32 %s27, %s39
      %s125 = ssub.s32 %s28, %s35
      %s126 = sor.u32 %s124, %s125
      %p127 = scmp.eq.s32.totalorder %s126, 0
      %s129 = sadd.s32 %s128, 1
      %s130 = scalar_select %p127, %s128, %s129
      %p133 = pneg %p127
      %p134 = scmp.eq.s32.totalorder %s20, 1
      %p135 = por %p133, %p134
      %p136 = scmp.ne.s32.totalorder %s128, %s131
      %p137 = scmp.eq.s32.totalorder %s20, 0
      %p138 = por %p136, %p137
      %p139 = scmp.ne.s32.totalorder %s128, %s131
      %p140 = scmp.eq.s32.totalorder %s25, 1
      %p141 = por %p139, %p140
      %p142 = scmp.ne.s32.totalorder %s131, %s132
      %p143 = scmp.eq.s32.totalorder %s25, 0
      %p144 = por %p142, %p143
      %p145 = scmp.ne.s32.totalorder %s131, %s132
      %p146 = scmp.eq.s32.totalorder %s26, 1
      %p147 = por %p145, %p146
      %p149 = scmp.ne.s32.totalorder %s132, %s148
      %p150 = scmp.eq.s32.totalorder %s26, 0
      %p151 = por %p149, %p150
      %p152 = scmp.le.s32.totalorder 1, %s20
      %p153 = scmp.lt.s32.totalorder %s20, 3
      %p154 = pnand %p152, %p153
      %p155 = pneg %p154
      // Predicated region
      $region9: #{tpu_custom_call.1} parent=5 // pred_check
        _
      $region10: #{tpu_custom_call.1} parent=5 // pred_check_branch
        %157 = sbr.rel (%p154) target = $region12
      $region11: #{tpu_custom_call.1} parent=5 // pred_region
        %s158 = ssub.s32 %s20, 1
      $region12: #{tpu_custom_call.1} parent=5 // pred_fallthru
        _
      %p159 = scmp.lt.s32.totalorder %s20, 2
      // Predicated region
      $region13: #{tpu_custom_call.1} parent=5 // pred_check
        %p160 = pneg %p159
      $region14: #{tpu_custom_call.1} parent=5 // pred_check_branch
        %162 = sbr.rel (%p160) target = $region16
      $region15: #{tpu_custom_call.1} parent=5 // pred_region
        // Predicated region
        $region17: #{tpu_custom_call.1} parent=15 // pred_check
          %p163 = pneg %p54
        $region18: #{tpu_custom_call.1} parent=15 // pred_check_branch
          %165 = sbr.rel (%p163) target = $region20
        $region19: #{tpu_custom_call.1} parent=15 // pred_region
          %s166 = sand.u32 %s44, 1
          %s167 = scalar_lea.sflag [#allocation5], %s166
          %s168 = sand.u32 %s44, 1
          %s169 = smul.addr %s168, 2
          %s170 = scalar_lea.vmem [#allocation4], %s169
          %s172 = ssub.s32 32, 32
          %173 = vsyncadd %s167, %s172
          %s174 = sadd.s32 %s28, %s27
          %s175 = smul.addr %s174, 32
          %s176 = scalar_lea.hbm %s1, %s175
          %s178 = sshll.u32 %s170, 4
          %s179 = int_to_ptr.vmem [resolvable:$true] %s178
          %181 = dma.hbm_to_vmem [thread:$0]  %s176, 32, %s179, %s167
        $region20: #{tpu_custom_call.1} parent=15 // pred_fallthru
          _
        // Predicated region
        $region21: #{tpu_custom_call.1} parent=15 // pred_check
          %p182 = pneg %p82
        $region22: #{tpu_custom_call.1} parent=15 // pred_check_branch
          %184 = sbr.rel (%p182) target = $region24
        $region23: #{tpu_custom_call.1} parent=15 // pred_region
          %p185 = scmp.lt.s32.totalorder %s27, 1
          %s186 = scalar_select %p185, %s27, 1
          %p187 = scmp.lt.s32.totalorder %s28, 0
          %s188 = scalar_select %p187, %s28, 0
          %s189 = sadd.s32 %s188, %s186
          %s190 = smul.addr %s189, 2
          %s191 = scalar_lea.vmem %s2, %s190
        $region24: #{tpu_custom_call.1} parent=15 // pred_fallthru
          _
        // Predicated region
        $region25: #{tpu_custom_call.1} parent=15 // pred_check
          %p192 = pneg %p110
        $region26: #{tpu_custom_call.1} parent=15 // pred_check_branch
          %194 = sbr.rel (%p192) target = $region28
        $region27: #{tpu_custom_call.1} parent=15 // pred_region
          %p195 = scmp.lt.s32.totalorder %s27, 1
          %s196 = scalar_select %p195, %s27, 1
          %p197 = scmp.lt.s32.totalorder %s28, 0
          %s198 = scalar_select %p197, %s28, 0
          %s199 = sadd.s32 %s198, %s196
          %s200 = smul.addr %s199, 2
          %s201 = scalar_lea.vmem %s3, %s200
        $region28: #{tpu_custom_call.1} parent=15 // pred_fallthru
          _
      $region16: #{tpu_custom_call.1} parent=5 // pred_fallthru
        _
      %p202 = scmp.le.s32.totalorder 1, %s20
      %p203 = scmp.lt.s32.totalorder %s20, 3
      %p204 = pnand %p202, %p203
      %p205 = pneg %p204
      // Predicated region
      $region29: #{tpu_custom_call.1} parent=5 // pred_check
        _
      $region30: #{tpu_custom_call.1} parent=5 // pred_check_branch
        %207 = sbr.rel (%p204) target = $region32
      $region31: #{tpu_custom_call.1} parent=5 // pred_region
        %s208 = ssub.s32 %s20, 1
        %s209 = sand.u32 %s47, 1
        %s210 = scalar_lea.sflag [#allocation5], %s209
        %s211 = sand.u32 %s47, 1
        %s212 = smul.addr %s211, 2
        %s213 = scalar_lea.vmem [#allocation4], %s212
        // Predicated region
        $region33: #{tpu_custom_call.1} parent=31 // pred_check
          %p214 = pneg %p60
        $region34: #{tpu_custom_call.1} parent=31 // pred_check_branch
          %216 = sbr.rel (%p214) target = $region36
        $region35: #{tpu_custom_call.1} parent=31 // pred_region
          %217 = dma.done %s210, 32
        $region36: #{tpu_custom_call.1} parent=31 // pred_fallthru
          _
        %s218 = sand.u32 %s47, 1
        %s219 = scalar_lea.sflag [#allocation5], %s218
        %s220 = sand.u32 %s47, 1
        %s221 = smul.addr %s220, 2
        %s222 = scalar_lea.vmem [#allocation4], %s221
        %p223 = pneg %p60
        %p224 = pneg %p57
        %p225 = scmp.lt.s32.totalorder %s29, 1
        %s226 = scalar_select %p225, %s29, 1
        %p227 = scmp.lt.s32.totalorder %s30, 0
        %s228 = scalar_select %p227, %s30, 0
        %s229 = sadd.s32 %s228, %s226
        %s230 = smul.addr %s229, 2
        %s231 = scalar_lea.vmem %s2, %s230
        %p232 = pneg %p88
        %p233 = pneg %p85
        %p234 = scmp.lt.s32.totalorder %s29, 1
        %s235 = scalar_select %p234, %s29, 1
        %p236 = scmp.lt.s32.totalorder %s30, 0
        %s237 = scalar_select %p236, %s30, 0
        %s238 = sadd.s32 %s237, %s235
        %s239 = smul.addr %s238, 2
        %s240 = scalar_lea.vmem %s3, %s239
        %p241 = pneg %p116
        %p242 = pneg %p113
        %p243 = pneg %p144
        %p244 = pneg %p141
        %s245 = sand.u32 %s131, 1
        %s246 = scalar_lea.sflag [#allocation6], %s245
        %s247 = sand.u32 %s131, 1
        %s248 = smul.addr %s247, 8
        %s249 = scalar_lea.vmem [#allocation7], %s248
        %p250 = scmp.lt.s32.totalorder %s29, 1
        %s251 = scalar_select %p250, %s29, 1
        %p252 = scmp.lt.s32.totalorder %s30, 0
        %s253 = scalar_select %p252, %s30, 0
        %s254 = sadd.s32 %s253, %s251
        %s255 = smul.addr %s254, 2
        %s256 = scalar_lea.vmem %s2, %s255
        %p257 = scmp.lt.s32.totalorder %s29, 1
        %s258 = scalar_select %p257, %s29, 1
        %p259 = scmp.lt.s32.totalorder %s30, 0
        %s260 = scalar_select %p259, %s30, 0
        %s261 = sadd.s32 %s260, %s258
        %s262 = smul.addr %s261, 2
        %s263 = scalar_lea.vmem %s3, %s262
        %s264 = sld [smem:[#allocation3 + %s29]]
        %v265 = vld [vmem:[%s213] sm:$0x3]
        %v266 = vld [vmem:[%s256] sm:$0x3]
        %vm267 = vcmp.gt.f32.partialorder %v266, 0.5
        %v268 = vld [vmem:[%s263] sm:$0x3]
        %vm269 = vcmp.gt.f32.partialorder %v268, 0.5
        %v270 = vand.u32 2147483647, %v265
        %v271 = vsub.f32 0.0, %v270
        %v272 = vmul.f32 %v271, 1.442695
        %v273 = vpow.pop %v272
        %v274 = vadd.f32 %v273, 1.0
        %v275 = vlog2.pop %v274
        %v276 = vmul.f32 %v275, 0.6931472
        %v277 = vsub.f32 0.0, %v265
        %v278 = vmax.f32 %v277, 0.0
        %v279 = vadd.f32 %v276, %v278
        %s280 = sadd.f32 %s264, 1.0
        %s281 = ssub.f32 1.0, %s264
        %v282 = vstv %s281
        %v283 = vmul.f32 %v282, %v265
        %v284 = vstv %s280
        %v285 = vmul.f32 %v284, %v279
        %v286 = vadd.f32 %v283, %v285
        %vm287 = vmand %vm267, %vm269
        %v288 = vsel %vm287, %v286, 0.0
        %vm289 = vcmask 1041408
        %v290 = vsel %vm289, %v288, 0.0
        %291 = vadd.xlane.f32.xlu0 %v290
        %v292 = vpop.xlane.xlu0 %291
        %v293 = vrot.slane %v292, 4
        %v294 = vadd.f32 %v292, %v293
        %v295 = vrot.slane %v294, 2
        %v296 = vadd.f32 %v294, %v295
        %v297 = vrot.slane %v296, 1
        %v298 = vadd.f32 %v296, %v297
        %s299 = vtos %v298
        %v300 = vsel %vm287, 1, 0
        %v301 = vcvt.s32.f32 %v300
        %v302 = vsel %vm289, %v301, 0.0
        %303 = vadd.xlane.f32.xlu0 %v302
        %v304 = vpop.xlane.xlu0 %303
        %v305 = vrot.slane %v304, 4
        %v306 = vadd.f32 %v304, %v305
        %v307 = vrot.slane %v306, 2
        %v308 = vadd.f32 %v306, %v307
        %v309 = vrot.slane %v308, 1
        %v310 = vadd.f32 %v308, %v309
        %s311 = vtos %v310
        %v312 = vlaneseq
        %v313 = vshrl.u32 %v312, 7
        %v314 = vlaneseq
        %v315 = vand.u32 %v314, 127
        %vm316 = vcmp.eq.s32.totalorder %v313, 0
        %vm317 = vcmp.eq.s32.totalorder %v315, 0
        %vm318 = vmand %vm316, %vm317
        %vm319 = vcmp.eq.s32.totalorder %v313, 1
        %vm320 = vmand %vm319, %vm317
        %v321 = vstv %s311
        %v322 = vsel %vm320, %v321, 0.0
        %v323 = vstv %s299
        %v324 = vsel %vm318, %v323, %v322
        %325 = vst [vmem:[%s249] sm:$0xff] %v324
        %s326 = sand.u32 %s131, 1
        %s327 = scalar_lea.sflag [#allocation6], %s326
        %s328 = sand.u32 %s131, 1
        %s329 = smul.addr %s328, 8
        %s330 = scalar_lea.vmem [#allocation7], %s329
        // Predicated region
        $region37: #{tpu_custom_call.1} parent=31 // pred_check
          %p331 = pneg %p141
        $region38: #{tpu_custom_call.1} parent=31 // pred_check_branch
          %333 = sbr.rel (%p331) target = $region40
        $region39: #{tpu_custom_call.1} parent=31 // pred_region
          %s335 = ssub.s32 128, 128
          %336 = vsyncadd %s327, %s335
          %s337 = sadd.s32 %s30, %s29
          %s338 = smul.addr %s337, 128
          %s339 = scalar_lea.hbm %s4, %s338
          %s341 = sshll.u32 %s330, 4
          %s342 = int_to_ptr.vmem [resolvable:$true] %s341
          %344 = dma.vmem_to_hbm [thread:$0]  %s342, 128, %s339, %s327
        $region40: #{tpu_custom_call.1} parent=31 // pred_fallthru
          _
      $region32: #{tpu_custom_call.1} parent=5 // pred_fallthru
        _
      %p345 = scmp.le.s32.totalorder 2, %s20
      // Predicated region
      $region41: #{tpu_custom_call.1} parent=5 // pred_check
        %p346 = pneg %p345
      $region42: #{tpu_custom_call.1} parent=5 // pred_check_branch
        %348 = sbr.rel (%p346) target = $region44
      $region43: #{tpu_custom_call.1} parent=5 // pred_region
        %s349 = ssub.s32 %s20, 2
        // Predicated region
        $region45: #{tpu_custom_call.1} parent=43 // pred_check
          %p350 = pneg %p147
        $region46: #{tpu_custom_call.1} parent=43 // pred_check_branch
          %352 = sbr.rel (%p350) target = $region48
        $region47: #{tpu_custom_call.1} parent=43 // pred_region
          %s353 = sand.u32 %s132, 1
          %s354 = scalar_lea.sflag [#allocation6], %s353
          %s355 = sand.u32 %s132, 1
          %s356 = smul.addr %s355, 8
          %s357 = scalar_lea.vmem [#allocation7], %s356
          %358 = dma.done %s354, 128
        $region48: #{tpu_custom_call.1} parent=43 // pred_fallthru
          _
      $region44: #{tpu_custom_call.1} parent=5 // pred_fallthru
        _
    $region6: #{tpu_custom_call.1} parent=1 // loop_footer
      %s24 = sadd.s32 1, %s20
    $region7: #{tpu_custom_call.1} parent=1 // loop_footer_branch
      %19 = sbr.rel target = $region3
    $region8: #{tpu_custom_call.1} parent=1 // loop_exit
      _
    %359 = vsyncpa [#allocation5], 1
    %s360 = scalar_lea.sflag [#allocation5], 1
    %361 = vsyncpa %s360, 1
    %362 = vsyncpa [#allocation6], 1
    %s363 = scalar_lea.sflag [#allocation6], 1
    %364 = vsyncpa %s363, 1

</llo_original>
